<compile_context>
chip_gen: v5e
topology: v5e:2x2
jax: 0.10.0
libtpu: 0.0.40
codegen_flags: <defaults>
</compile_context>

<pallas_src>
import functools

import numpy as np
import jax
import jax.numpy as jnp
from jax.experimental import pallas as pl
from jax.experimental.pallas import tpu as pltpu

# Small hyperparameters consistent with the module's structure.
VOCAB_SIZE = 100
EMBED_DIM = 32
NUM_HEADS = 4
HEAD_DIM = EMBED_DIM // NUM_HEADS
MAX_LENGTH = 8
HIDDEN_CLF = 50
NUM_CLASSES = 2
BATCH = 2
LN_EPS = 1e-5

LANE = 128
# ---------------------------------------------------------------------------
# Packed parameter-slab layout (static, 128-lane-aligned offsets shared
# between wrapper and kernel).  Weight slab: (EMBED_DIM, W_COLS); every Linear
# weight stored as (in, out) columns.
W_Q, W_K, W_V = 0, 128, 256        # fused QKV region = cols [0, 384)
W_O = 384                          # attention out-proj
W_AO = 512                         # atten_output
W_FAO = 640                        # final_atten_output
W_C1 = 768                         # clf_output_one (width 50)
W_MEH = 896                        # (E, H) per-head segment-sum constant
W_COLS = 1024

# Bias / gain slab: one (1, B_COLS) row, every section 128-lane aligned.
B_QKV = 0                          # width 384 (bq@0, bk@128, bv@256)
B_O = 384
B_G1, B_BE1 = 512, 640
B_AO, B_FAO = 768, 896
B_G2, B_BE2 = 1024, 1152
B_C1 = 1280                        # width 50
B_C2 = 1408                        # width 2
B_COLS = 1536


# ----------------------------------------------------------------------------
# Parameter construction (deterministic, in-script)
# ----------------------------------------------------------------------------
def get_positional_encoding(max_length, embed_dim):
    """Bit-for-bit port of Transformer.getPositionalEncoding."""
    pe = np.zeros((max_length, embed_dim), dtype=np.float32)
    div = np.zeros((embed_dim,), dtype=np.float32)
    for i in range(embed_dim):
        div[i] = 10000.0 ** (2 * i / embed_dim)
    for pos in range(max_length):
        for i in range(0, embed_dim, 2):
            pe[pos, i] = np.sin(pos / div[i])
            if i != embed_dim - 1:
                pe[pos, i + 1] = np.cos(pos / div[i + 1])
    return pe[None, :, :]  # (1, L, E)


def init_params(key):
    E, H50, C = EMBED_DIM, HIDDEN_CLF, NUM_CLASSES
    ks = jax.random.split(key, 16)

    def w(k, shape, scale=0.05):
        return (scale * jax.random.normal(k, shape)).astype(jnp.float32)

    return dict(
        emb=w(ks[0], (VOCAB_SIZE, E), 1.0),
        pos=jnp.asarray(get_positional_encoding(MAX_LENGTH, E), jnp.float32),
        # nn.MultiheadAttention in_proj (split into q/k/v) and out_proj
        wq=w(ks[1], (E, E)), wk=w(ks[2], (E, E)), wv=w(ks[3], (E, E)),
        bq=w(ks[4], (E,)), bk=w(ks[5], (E,)), bv=w(ks[6], (E,)),
        wo=w(ks[7], (E, E)), bo=w(ks[8], (E,)),
        # LayerNorms (PyTorch init: gamma=1, beta=0)
        g1=jnp.ones((E,), jnp.float32), be1=jnp.zeros((E,), jnp.float32),
        g2=jnp.ones((E,), jnp.float32), be2=jnp.zeros((E,), jnp.float32),
        # feed-forward linears
        wao=w(ks[9], (E, E)), bao=w(ks[10], (E,)),
        wfao=w(ks[11], (E, E)), bfao=w(ks[12], (E,)),
        # classifier head
        w1=w(ks[13], (H50, E)), b1=w(ks[14], (H50,)),
        w2=w(ks[15], (C, H50)), b2=jnp.zeros((C,), jnp.float32),
    )


# ----------------------------------------------------------------------------
# Pallas kernel
# ----------------------------------------------------------------------------
def _layernorm(x, g, b):
    mu = jnp.mean(x, axis=-1, keepdims=True)
    var = jnp.mean((x - mu) ** 2, axis=-1, keepdims=True)
    return (x - mu) * jax.lax.rsqrt(var + LN_EPS) * g + b


def transformer_kernel(tok_ref, emb_ref, pos_ref, w_ref, w2_ref, b_ref,
                       mhe_ref, sel_ref, rot_ref, out_ref, *, batch):
    L, B, E, H = MAX_LENGTH, batch, EMBED_DIM, NUM_HEADS
    R = L * B

    # ---- embedding lookup as ONE one-hot MXU matmul --------------------------
    # sqrt(E) is folded into emb, the positional encoding is pre-tiled to the
    # flat (R, E) row layout (row r = l*B + b).
    onehot = (tok_ref[...] ==
              jax.lax.broadcasted_iota(jnp.int32, (R, VOCAB_SIZE), 1)
              ).astype(jnp.float32)                             # (R, VOCAB)
    x = (jnp.dot(onehot, emb_ref[...], preferred_element_type=jnp.float32)
         + pos_ref[...])                                        # (R, E)

    # ---- fused, lane-aligned QKV projection ----------------------------------
    # q columns / q bias already carry the 1/sqrt(head_dim) scale.
    qkv = (jnp.dot(x, w_ref[:, W_Q:W_Q + 3 * LANE],
                   preferred_element_type=jnp.float32)
           + b_ref[:, B_QKV:B_QKV + 3 * LANE])                  # (R, 384)
    q = qkv[:, 0:E]                                             # tile-aligned
    k = qkv[:, LANE:LANE + E]
    v = qkv[:, 2 * LANE:2 * LANE + E]

    # ---- all-head self-attention over the B-wide axis (rank-2 only) ----------
    m_eh = w_ref[:, W_MEH:W_MEH + H]                            # (E, H) const
    m_he = mhe_ref[...]                                         # (H, E) const
    scores = [jnp.dot(q * k, m_eh, preferred_element_type=jnp.float32)]
    values = [v]
    for t in range(1, B):
        rot = rot_ref[(t - 1) * R:t * R, :]                     # (R, R) const perm
        k_t = jnp.dot(rot, k, preferred_element_type=jnp.float32)
        v_t = jnp.dot(rot, v, preferred_element_type=jnp.float32)
        scores.append(jnp.dot(q * k_t, m_eh, preferred_element_type=jnp.float32))
        values.append(v_t)
    # TODO(synk): at realistic L/B, move the constant permutation off the MXU
    # (pltpu.roll on the sublane axis) or grid over l with true (B, B) scores.

    smax = scores[0]
    for t in range(1, B):
        smax = jnp.maximum(smax, scores[t])
    probs = [jnp.exp(s_t - smax) for s_t in scores]
    denom = probs[0]
    for t in range(1, B):
        denom = denom + probs[t]
    ctx = jnp.dot(probs[0], m_he, preferred_element_type=jnp.float32) * values[0]
    for t in range(1, B):
        ctx = ctx + (jnp.dot(probs[t], m_he, preferred_element_type=jnp.float32)
                     * values[t])
    # Normalize once, after the accumulation loop (EUP approx reciprocal).
    inv = pl.reciprocal(denom, approx=True)                     # (R, H)
    ctx = ctx * jnp.dot(inv, m_he, preferred_element_type=jnp.float32)

    attn = (jnp.dot(ctx, w_ref[:, W_O:W_O + E],
                    preferred_element_type=jnp.float32)
            + b_ref[:, B_O:B_O + E])

    # ---- residual + layernorm1 ----------------------------------------------
    h1 = _layernorm(x + attn, b_ref[:, B_G1:B_G1 + E], b_ref[:, B_BE1:B_BE1 + E])

    # ---- feed-forward: atten_output -> relu -> final_atten_output -----------
    ff = jnp.maximum(
        jnp.dot(h1, w_ref[:, W_AO:W_AO + E], preferred_element_type=jnp.float32)
        + b_ref[:, B_AO:B_AO + E], 0.0)
    ff = (jnp.dot(ff, w_ref[:, W_FAO:W_FAO + E],
                  preferred_element_type=jnp.float32)
          + b_ref[:, B_FAO:B_FAO + E])

    # ---- residual + layernorm2 ----------------------------------------------
    h2 = _layernorm(h1 + ff, b_ref[:, B_G2:B_G2 + E], b_ref[:, B_BE2:B_BE2 + E])

    # ---- mean over original dim=1 (the l axis); 1/L folded into sel ----------
    pooled = jnp.dot(sel_ref[...], h2, preferred_element_type=jnp.float32)  # (B, E)
    # TODO(synk): dropout layers are treated as identity (inference semantics).

    # ---- classifier head + softmax over classes (EXACT normalization) --------
    c1 = jnp.maximum(
        jnp.dot(pooled, w_ref[:, W_C1:W_C1 + HIDDEN_CLF],
                preferred_element_type=jnp.float32)
        + b_ref[:, B_C1:B_C1 + HIDDEN_CLF], 0.0)                # (B, 50)
    logits = (jnp.dot(c1, w2_ref[...], preferred_element_type=jnp.float32)
              + b_ref[:, B_C2:B_C2 + NUM_CLASSES])              # (B, 2)
    logits = logits - jnp.max(logits, axis=1, keepdims=True)
    p_out = jnp.exp(logits)
    out_ref[...] = p_out / jnp.sum(p_out, axis=1, keepdims=True)


# ----------------------------------------------------------------------------
# Wrapper: parameter packing + pallas_call
# ----------------------------------------------------------------------------
def transformer_forward(x_tokens, p):
    B, L = x_tokens.shape
    assert L == MAX_LENGTH
    E, H = EMBED_DIM, NUM_HEADS
    R = L * B
    scale = 1.0 / float(np.sqrt(HEAD_DIM))
    sqrt_e = float(np.sqrt(E))

    # token ids in flat (l, b) row order (row r = l*B + b), small VMEM column
    tokens = x_tokens.T.reshape(R, 1).astype(jnp.int32)
    # sqrt(E) folded into the 2-D (VOCAB, E) embedding table
    emb = (sqrt_e * p["emb"]).astype(jnp.float32)
    # positional encoding pre-tiled to the flat (R, E) row layout
    pos = jnp.repeat(p["pos"].reshape(MAX_LENGTH, E).astype(jnp.float32), B, axis=0)

    def t(w):    # pre-transpose Linear weights to (in, out)
        return w.T.astype(jnp.float32)

    # --- compile-time-constant matrices, built once at pack time -------------
    m_eh_np = (np.arange(E)[:, None] // HEAD_DIM ==
               np.arange(H)[None, :]).astype(np.float32)        # (E, H)
    m_he = jnp.asarray(m_eh_np.T)                               # (H, E)
    sel = jnp.asarray(                                          # (B, R), 1/L folded
        (np.arange(R)[None, :] % B == np.arange(B)[:, None]).astype(np.float32)
        / float(L))
    ii, jj = np.arange(R)[:, None], np.arange(R)[None, :]
    rots = [((ii // B == jj // B) &
             (jj % B == (ii % B + t_) % B)).astype(np.float32)
            for t_ in range(1, B)]
    rot = jnp.asarray(np.concatenate(rots, axis=0) if rots
                      else np.zeros((R, R), np.float32))        # ((B-1)*R, R)

    # --- one 128-lane-aligned (E, 1024) weight slab ---------------------------
    wslab = jnp.zeros((E, W_COLS), jnp.float32)
    wslab = wslab.at[:, W_Q:W_Q + E].set(t(p["wq"]) * scale)    # q scale folded
    wslab = wslab.at[:, W_K:W_K + E].set(t(p["wk"]))
    wslab = wslab.at[:, W_V:W_V + E].set(t(p["wv"]))
    wslab = wslab.at[:, W_O:W_O + E].set(t(p["wo"]))
    wslab = wslab.at[:, W_AO:W_AO + E].set(t(p["wao"]))
    wslab = wslab.at[:, W_FAO:W_FAO + E].set(t(p["wfao"]))
    wslab = wslab.at[:, W_C1:W_C1 + HIDDEN_CLF].set(t(p["w1"]))
    wslab = wslab.at[:, W_MEH:W_MEH + H].set(jnp.asarray(m_eh_np))

    # --- one 128-lane-aligned (1, 1536) bias / gain row -----------------------
    bias = jnp.zeros((1, B_COLS), jnp.float32)
    bias = bias.at[0, B_QKV:B_QKV + E].set(p["bq"] * scale)
    bias = bias.at[0, B_QKV + LANE:B_QKV + LANE + E].set(p["bk"])
    bias = bias.at[0, B_QKV + 2 * LANE:B_QKV + 2 * LANE + E].set(p["bv"])
    bias = bias.at[0, B_O:B_O + E].set(p["bo"])
    bias = bias.at[0, B_G1:B_G1 + E].set(p["g1"])
    bias = bias.at[0, B_BE1:B_BE1 + E].set(p["be1"])
    bias = bias.at[0, B_AO:B_AO + E].set(p["bao"])
    bias = bias.at[0, B_FAO:B_FAO + E].set(p["bfao"])
    bias = bias.at[0, B_G2:B_G2 + E].set(p["g2"])
    bias = bias.at[0, B_BE2:B_BE2 + E].set(p["be2"])
    bias = bias.at[0, B_C1:B_C1 + HIDDEN_CLF].set(p["b1"])
    bias = bias.at[0, B_C2:B_C2 + NUM_CLASSES].set(p["b2"])

    w2t = t(p["w2"])                                            # (50, 2)

    kernel = functools.partial(transformer_kernel, batch=B)
    vmem = pl.BlockSpec(memory_space=pltpu.MemorySpace.VMEM)
    # NOTE: at realistic sizes, cast MXU operands (wslab/emb/activations) to
    # bf16 (f32 accumulation; keep LN/softmax elementwise math f32 — required
    # on v5e), add a grid over the L axis with dimension_semantics=
    # ("parallel",) so v7x's 2 TensorCores split the work, set an explicit
    # pltpu.CompilerParams(vmem_limit_bytes=...) for v7x's 64 MiB VMEM, and
    # make the output lane-dense.  At this toy size a single grid-less f32
    # invocation has the lowest overhead.
    return pl.pallas_call(
        kernel,
        out_shape=jax.ShapeDtypeStruct((B, NUM_CLASSES), jnp.float32),
        in_specs=[vmem] * 9,
        out_specs=vmem,
    )(tokens, emb, pos, wslab, w2t, bias, m_he, sel, rot)


# ----------------------------------------------------------------------------
# Pure-JAX reference mirroring the PyTorch forward semantics (eval mode)
# ----------------------------------------------------------------------------
def reference_forward(x_tokens, p):
    E = EMBED_DIM
    H, hd = NUM_HEADS, HEAD_DIM
    emb = jnp.take(p["emb"], x_tokens, axis=0)
    model_in = float(np.sqrt(E)) * emb + p["pos"]              # (B, L, E)
    B, L, _ = model_in.shape

    q = model_in @ p["wq"].T + p["bq"]
    k = model_in @ p["wk"].T + p["bk"]
    v = model_in @ p["wv"].T + p["bv"]
    q = q.reshape(B, L, H, hd)
    k = k.reshape(B, L, H, hd)
    v = v.reshape(B, L, H, hd)
    s = jnp.einsum("blhd,mlhd->lhbm", q, k) / float(np.sqrt(hd))
    a = jax.nn.softmax(s, axis=-1)
    o = jnp.einsum("lhbm,mlhd->blhd", a, v).reshape(B, L, E)
    o = o @ p["wo"].T + p["bo"]

    def ln(x, g, b):
        mu = x.mean(-1, keepdims=True)
        var = ((x - mu) ** 2).mean(-1, keepdims=True)
        return (x - mu) / jnp.sqrt(var + LN_EPS) * g + b

    h1 = ln(model_in + o, p["g1"], p["be1"])
    ff = jax.nn.relu(h1 @ p["wao"].T + p["bao"])
    ff = ff @ p["wfao"].T + p["bfao"]
    h2 = ln(h1 + ff, p["g2"], p["be2"])
    pooled = h2.mean(axis=1)
    c1 = jax.nn.relu(pooled @ p["w1"].T + p["b1"])
    logits = c1 @ p["w2"].T + p["b2"]
    return jax.nn.softmax(logits, axis=1)


if __name__ == "__main__":
    key = jax.random.PRNGKey(0)
    pkey, xkey = jax.random.split(key)
    params = init_params(pkey)
    # token ids, shape (batch, max_length)
    x = jax.random.randint(xkey, (BATCH, MAX_LENGTH), 0, VOCAB_SIZE, dtype=jnp.int32)

    out = jax.block_until_ready(transformer_forward(x, params))
    ref = jax.block_until_ready(reference_forward(x, params))

    assert out.shape == (BATCH, NUM_CLASSES), out.shape
    np.testing.assert_allclose(np.asarray(out), np.asarray(ref), rtol=1e-2, atol=1e-2)
    np.testing.assert_allclose(np.asarray(out).sum(axis=1), 1.0, atol=1e-4)
    print("KERNEL_OK")
</pallas_src>

<mosaic_0001>
module attributes {stable_mosaic.version = 11 : i64} {
  func.func @transformer_kernel(%arg0: memref<16x1xi32, #tpu.memory_space<vmem>>, %arg1: memref<100x32xf32, #tpu.memory_space<vmem>>, %arg2: memref<16x32xf32, #tpu.memory_space<vmem>>, %arg3: memref<32x1024xf32, #tpu.memory_space<vmem>>, %arg4: memref<50x2xf32, #tpu.memory_space<vmem>>, %arg5: memref<1x1536xf32, #tpu.memory_space<vmem>>, %arg6: memref<4x32xf32, #tpu.memory_space<vmem>>, %arg7: memref<2x16xf32, #tpu.memory_space<vmem>>, %arg8: memref<16x16xf32, #tpu.memory_space<vmem>>, %arg9: memref<2x2xf32, #tpu.memory_space<vmem>>) attributes {dimension_semantics = [], scalar_prefetch = 0 : i64, scratch_operands = 0 : i64, tpu.core_type = #tpu.core_type<tc>} {
    %c0 = arith.constant 0 : index
    %c0_0 = arith.constant 0 : index
    %0 = vector.load %arg0[%c0, %c0_0] : memref<16x1xi32, #tpu.memory_space<vmem>>, vector<16x1xi32>
    %1 = tpu.iota {dimensions = array<i32: 1>} : vector<16x100xi32>
    %2 = vector.broadcast %0 : vector<16x1xi32> to vector<16x100xi32>
    %3 = arith.cmpi eq, %2, %1 : vector<16x100xi32>
    %4 = arith.extui %3 : vector<16x100xi1> to vector<16x100xi32>
    %5 = arith.sitofp %4 : vector<16x100xi32> to vector<16x100xf32>
    %c0_1 = arith.constant 0 : index
    %c0_2 = arith.constant 0 : index
    %6 = vector.load %arg1[%c0_1, %c0_2] : memref<100x32xf32, #tpu.memory_space<vmem>>, vector<100x32xf32>
    %cst = arith.constant dense<0.000000e+00> : vector<16x32xf32>
    %7 = tpu.matmul %5, %6, %cst {dimension_numbers = #tpu.dot_dimension_numbers<[1], [0], [0], [1], [0, 0, 1, 1], [], []>} : vector<16x100xf32>, vector<100x32xf32>, vector<16x32xf32> -> vector<16x32xf32>
    %c0_3 = arith.constant 0 : index
    %c0_4 = arith.constant 0 : index
    %8 = vector.load %arg2[%c0_3, %c0_4] : memref<16x32xf32, #tpu.memory_space<vmem>>, vector<16x32xf32>
    %9 = arith.addf %7, %8 : vector<16x32xf32>
    %c0_5 = arith.constant 0 : index
    %c0_6 = arith.constant 0 : index
    %10 = vector.load %arg3[%c0_5, %c0_6] : memref<32x1024xf32, #tpu.memory_space<vmem>>, vector<32x384xf32>
    %cst_7 = arith.constant dense<0.000000e+00> : vector<16x384xf32>
    %11 = tpu.matmul %9, %10, %cst_7 {dimension_numbers = #tpu.dot_dimension_numbers<[1], [0], [0], [1], [0, 0, 1, 1], [], []>} : vector<16x32xf32>, vector<32x384xf32>, vector<16x384xf32> -> vector<16x384xf32>
    %c0_8 = arith.constant 0 : index
    %c0_9 = arith.constant 0 : index
    %12 = vector.load %arg5[%c0_8, %c0_9] : memref<1x1536xf32, #tpu.memory_space<vmem>>, vector<1x384xf32>
    %13 = vector.broadcast %12 : vector<1x384xf32> to vector<16x384xf32>
    %14 = arith.addf %11, %13 : vector<16x384xf32>
    %15 = vector.extract_strided_slice %14 {offsets = [0, 0], sizes = [16, 32], strides = [1, 1]} : vector<16x384xf32> to vector<16x32xf32>
    %16 = vector.extract_strided_slice %14 {offsets = [0, 128], sizes = [16, 32], strides = [1, 1]} : vector<16x384xf32> to vector<16x32xf32>
    %17 = vector.extract_strided_slice %14 {offsets = [0, 256], sizes = [16, 32], strides = [1, 1]} : vector<16x384xf32> to vector<16x32xf32>
    %c0_10 = arith.constant 0 : index
    %c896 = arith.constant 896 : index
    %18 = vector.load %arg3[%c0_10, %c896] : memref<32x1024xf32, #tpu.memory_space<vmem>>, vector<32x4xf32>
    %c0_11 = arith.constant 0 : index
    %c0_12 = arith.constant 0 : index
    %19 = vector.load %arg6[%c0_11, %c0_12] : memref<4x32xf32, #tpu.memory_space<vmem>>, vector<4x32xf32>
    %20 = arith.mulf %15, %16 : vector<16x32xf32>
    %cst_13 = arith.constant dense<0.000000e+00> : vector<16x4xf32>
    %21 = tpu.matmul %20, %18, %cst_13 {dimension_numbers = #tpu.dot_dimension_numbers<[1], [0], [0], [1], [0, 0, 1, 1], [], []>} : vector<16x32xf32>, vector<32x4xf32>, vector<16x4xf32> -> vector<16x4xf32>
    %c0_14 = arith.constant 0 : index
    %c0_15 = arith.constant 0 : index
    %22 = vector.load %arg8[%c0_14, %c0_15] : memref<16x16xf32, #tpu.memory_space<vmem>>, vector<16x16xf32>
    %cst_16 = arith.constant dense<0.000000e+00> : vector<16x32xf32>
    %23 = tpu.matmul %22, %16, %cst_16 {dimension_numbers = #tpu.dot_dimension_numbers<[1], [0], [0], [1], [0, 0, 1, 1], [], []>} : vector<16x16xf32>, vector<16x32xf32>, vector<16x32xf32> -> vector<16x32xf32>
    %cst_17 = arith.constant dense<0.000000e+00> : vector<16x32xf32>
    %24 = tpu.matmul %22, %17, %cst_17 {dimension_numbers = #tpu.dot_dimension_numbers<[1], [0], [0], [1], [0, 0, 1, 1], [], []>} : vector<16x16xf32>, vector<16x32xf32>, vector<16x32xf32> -> vector<16x32xf32>
    %25 = arith.mulf %15, %23 : vector<16x32xf32>
    %cst_18 = arith.constant dense<0.000000e+00> : vector<16x4xf32>
    %26 = tpu.matmul %25, %18, %cst_18 {dimension_numbers = #tpu.dot_dimension_numbers<[1], [0], [0], [1], [0, 0, 1, 1], [], []>} : vector<16x32xf32>, vector<32x4xf32>, vector<16x4xf32> -> vector<16x4xf32>
    %27 = arith.maximumf %21, %26 : vector<16x4xf32>
    %28 = arith.subf %21, %27 : vector<16x4xf32>
    %29 = math.exp %28 : vector<16x4xf32>
    %30 = arith.subf %26, %27 : vector<16x4xf32>
    %31 = math.exp %30 : vector<16x4xf32>
    %32 = arith.addf %29, %31 : vector<16x4xf32>
    %cst_19 = arith.constant dense<0.000000e+00> : vector<16x32xf32>
    %33 = tpu.matmul %29, %19, %cst_19 {dimension_numbers = #tpu.dot_dimension_numbers<[1], [0], [0], [1], [0, 0, 1, 1], [], []>} : vector<16x4xf32>, vector<4x32xf32>, vector<16x32xf32> -> vector<16x32xf32>
    %34 = arith.mulf %33, %17 : vector<16x32xf32>
    %cst_20 = arith.constant dense<0.000000e+00> : vector<16x32xf32>
    %35 = tpu.matmul %31, %19, %cst_20 {dimension_numbers = #tpu.dot_dimension_numbers<[1], [0], [0], [1], [0, 0, 1, 1], [], []>} : vector<16x4xf32>, vector<4x32xf32>, vector<16x32xf32> -> vector<16x32xf32>
    %36 = arith.mulf %35, %24 : vector<16x32xf32>
    %37 = arith.addf %34, %36 : vector<16x32xf32>
    %38 = tpu.reciprocal %32 {approx = true} : vector<16x4xf32> -> vector<16x4xf32>
    %cst_21 = arith.constant dense<0.000000e+00> : vector<16x32xf32>
    %39 = tpu.matmul %38, %19, %cst_21 {dimension_numbers = #tpu.dot_dimension_numbers<[1], [0], [0], [1], [0, 0, 1, 1], [], []>} : vector<16x4xf32>, vector<4x32xf32>, vector<16x32xf32> -> vector<16x32xf32>
    %40 = arith.mulf %37, %39 : vector<16x32xf32>
    %c0_22 = arith.constant 0 : index
    %c384 = arith.constant 384 : index
    %41 = vector.load %arg3[%c0_22, %c384] : memref<32x1024xf32, #tpu.memory_space<vmem>>, vector<32x32xf32>
    %cst_23 = arith.constant dense<0.000000e+00> : vector<16x32xf32>
    %42 = tpu.matmul %40, %41, %cst_23 {dimension_numbers = #tpu.dot_dimension_numbers<[1], [0], [0], [1], [0, 0, 1, 1], [], []>} : vector<16x32xf32>, vector<32x32xf32>, vector<16x32xf32> -> vector<16x32xf32>
    %c0_24 = arith.constant 0 : index
    %c384_25 = arith.constant 384 : index
    %43 = vector.load %arg5[%c0_24, %c384_25] : memref<1x1536xf32, #tpu.memory_space<vmem>>, vector<1x32xf32>
    %44 = vector.broadcast %43 : vector<1x32xf32> to vector<16x32xf32>
    %45 = arith.addf %42, %44 : vector<16x32xf32>
    %46 = arith.addf %9, %45 : vector<16x32xf32>
    %c0_26 = arith.constant 0 : index
    %c512 = arith.constant 512 : index
    %47 = vector.load %arg5[%c0_26, %c512] : memref<1x1536xf32, #tpu.memory_space<vmem>>, vector<1x32xf32>
    %c0_27 = arith.constant 0 : index
    %c640 = arith.constant 640 : index
    %48 = vector.load %arg5[%c0_27, %c640] : memref<1x1536xf32, #tpu.memory_space<vmem>>, vector<1x32xf32>
    %cst_28 = arith.constant dense<0.000000e+00> : vector<16xf32>
    %49 = vector.multi_reduction <add>, %46, %cst_28 [1] : vector<16x32xf32> to vector<16xf32>
    %50 = vector.shape_cast %49 : vector<16xf32> to vector<16x1xf32>
    %cst_29 = arith.constant 3.200000e+01 : f32
    %51 = vector.broadcast %cst_29 : f32 to vector<16x1xf32>
    %52 = arith.divf %50, %51 : vector<16x1xf32>
    %53 = vector.broadcast %52 : vector<16x1xf32> to vector<16x32xf32>
    %54 = arith.subf %46, %53 : vector<16x32xf32>
    %55 = arith.mulf %54, %54 : vector<16x32xf32>
    %cst_30 = arith.constant dense<0.000000e+00> : vector<16xf32>
    %56 = vector.multi_reduction <add>, %55, %cst_30 [1] : vector<16x32xf32> to vector<16xf32>
    %57 = vector.shape_cast %56 : vector<16xf32> to vector<16x1xf32>
    %cst_31 = arith.constant 3.200000e+01 : f32
    %58 = vector.broadcast %cst_31 : f32 to vector<16x1xf32>
    %59 = arith.divf %57, %58 : vector<16x1xf32>
    %60 = vector.broadcast %52 : vector<16x1xf32> to vector<16x32xf32>
    %61 = arith.subf %46, %60 : vector<16x32xf32>
    %cst_32 = arith.constant 9.99999974E-6 : f32
    %62 = vector.broadcast %cst_32 : f32 to vector<16x1xf32>
    %63 = arith.addf %59, %62 : vector<16x1xf32>
    %64 = math.rsqrt %63 : vector<16x1xf32>
    %65 = vector.broadcast %64 : vector<16x1xf32> to vector<16x32xf32>
    %66 = arith.mulf %61, %65 : vector<16x32xf32>
    %67 = vector.broadcast %47 : vector<1x32xf32> to vector<16x32xf32>
    %68 = arith.mulf %66, %67 : vector<16x32xf32>
    %69 = vector.broadcast %48 : vector<1x32xf32> to vector<16x32xf32>
    %70 = arith.addf %68, %69 : vector<16x32xf32>
    %c0_33 = arith.constant 0 : index
    %c512_34 = arith.constant 512 : index
    %71 = vector.load %arg3[%c0_33, %c512_34] : memref<32x1024xf32, #tpu.memory_space<vmem>>, vector<32x32xf32>
    %cst_35 = arith.constant dense<0.000000e+00> : vector<16x32xf32>
    %72 = tpu.matmul %70, %71, %cst_35 {dimension_numbers = #tpu.dot_dimension_numbers<[1], [0], [0], [1], [0, 0, 1, 1], [], []>} : vector<16x32xf32>, vector<32x32xf32>, vector<16x32xf32> -> vector<16x32xf32>
    %c0_36 = arith.constant 0 : index
    %c768 = arith.constant 768 : index
    %73 = vector.load %arg5[%c0_36, %c768] : memref<1x1536xf32, #tpu.memory_space<vmem>>, vector<1x32xf32>
    %74 = vector.broadcast %73 : vector<1x32xf32> to vector<16x32xf32>
    %75 = arith.addf %72, %74 : vector<16x32xf32>
    %cst_37 = arith.constant 0.000000e+00 : f32
    %76 = vector.broadcast %cst_37 : f32 to vector<16x32xf32>
    %77 = arith.maximumf %75, %76 : vector<16x32xf32>
    %c0_38 = arith.constant 0 : index
    %c640_39 = arith.constant 640 : index
    %78 = vector.load %arg3[%c0_38, %c640_39] : memref<32x1024xf32, #tpu.memory_space<vmem>>, vector<32x32xf32>
    %cst_40 = arith.constant dense<0.000000e+00> : vector<16x32xf32>
    %79 = tpu.matmul %77, %78, %cst_40 {dimension_numbers = #tpu.dot_dimension_numbers<[1], [0], [0], [1], [0, 0, 1, 1], [], []>} : vector<16x32xf32>, vector<32x32xf32>, vector<16x32xf32> -> vector<16x32xf32>
    %c0_41 = arith.constant 0 : index
    %c896_42 = arith.constant 896 : index
    %80 = vector.load %arg5[%c0_41, %c896_42] : memref<1x1536xf32, #tpu.memory_space<vmem>>, vector<1x32xf32>
    %81 = vector.broadcast %80 : vector<1x32xf32> to vector<16x32xf32>
    %82 = arith.addf %79, %81 : vector<16x32xf32>
    %83 = arith.addf %70, %82 : vector<16x32xf32>
    %c0_43 = arith.constant 0 : index
    %c1024 = arith.constant 1024 : index
    %84 = vector.load %arg5[%c0_43, %c1024] : memref<1x1536xf32, #tpu.memory_space<vmem>>, vector<1x32xf32>
    %c0_44 = arith.constant 0 : index
    %c1152 = arith.constant 1152 : index
    %85 = vector.load %arg5[%c0_44, %c1152] : memref<1x1536xf32, #tpu.memory_space<vmem>>, vector<1x32xf32>
    %cst_45 = arith.constant dense<0.000000e+00> : vector<16xf32>
    %86 = vector.multi_reduction <add>, %83, %cst_45 [1] : vector<16x32xf32> to vector<16xf32>
    %87 = vector.shape_cast %86 : vector<16xf32> to vector<16x1xf32>
    %cst_46 = arith.constant 3.200000e+01 : f32
    %88 = vector.broadcast %cst_46 : f32 to vector<16x1xf32>
    %89 = arith.divf %87, %88 : vector<16x1xf32>
    %90 = vector.broadcast %89 : vector<16x1xf32> to vector<16x32xf32>
    %91 = arith.subf %83, %90 : vector<16x32xf32>
    %92 = arith.mulf %91, %91 : vector<16x32xf32>
    %cst_47 = arith.constant dense<0.000000e+00> : vector<16xf32>
    %93 = vector.multi_reduction <add>, %92, %cst_47 [1] : vector<16x32xf32> to vector<16xf32>
    %94 = vector.shape_cast %93 : vector<16xf32> to vector<16x1xf32>
    %cst_48 = arith.constant 3.200000e+01 : f32
    %95 = vector.broadcast %cst_48 : f32 to vector<16x1xf32>
    %96 = arith.divf %94, %95 : vector<16x1xf32>
    %97 = vector.broadcast %89 : vector<16x1xf32> to vector<16x32xf32>
    %98 = arith.subf %83, %97 : vector<16x32xf32>
    %cst_49 = arith.constant 9.99999974E-6 : f32
    %99 = vector.broadcast %cst_49 : f32 to vector<16x1xf32>
    %100 = arith.addf %96, %99 : vector<16x1xf32>
    %101 = math.rsqrt %100 : vector<16x1xf32>
    %102 = vector.broadcast %101 : vector<16x1xf32> to vector<16x32xf32>
    %103 = arith.mulf %98, %102 : vector<16x32xf32>
    %104 = vector.broadcast %84 : vector<1x32xf32> to vector<16x32xf32>
    %105 = arith.mulf %103, %104 : vector<16x32xf32>
    %106 = vector.broadcast %85 : vector<1x32xf32> to vector<16x32xf32>
    %107 = arith.addf %105, %106 : vector<16x32xf32>
    %c0_50 = arith.constant 0 : index
    %c0_51 = arith.constant 0 : index
    %108 = vector.load %arg7[%c0_50, %c0_51] : memref<2x16xf32, #tpu.memory_space<vmem>>, vector<2x16xf32>
    %cst_52 = arith.constant dense<0.000000e+00> : vector<2x32xf32>
    %109 = tpu.matmul %108, %107, %cst_52 {dimension_numbers = #tpu.dot_dimension_numbers<[1], [0], [0], [1], [0, 0, 1, 1], [], []>} : vector<2x16xf32>, vector<16x32xf32>, vector<2x32xf32> -> vector<2x32xf32>
    %c0_53 = arith.constant 0 : index
    %c768_54 = arith.constant 768 : index
    %110 = vector.load %arg3[%c0_53, %c768_54] : memref<32x1024xf32, #tpu.memory_space<vmem>>, vector<32x50xf32>
    %cst_55 = arith.constant dense<0.000000e+00> : vector<2x50xf32>
    %111 = tpu.matmul %109, %110, %cst_55 {dimension_numbers = #tpu.dot_dimension_numbers<[1], [0], [0], [1], [0, 0, 1, 1], [], []>} : vector<2x32xf32>, vector<32x50xf32>, vector<2x50xf32> -> vector<2x50xf32>
    %c0_56 = arith.constant 0 : index
    %c1280 = arith.constant 1280 : index
    %112 = vector.load %arg5[%c0_56, %c1280] : memref<1x1536xf32, #tpu.memory_space<vmem>>, vector<1x50xf32>
    %113 = vector.broadcast %112 : vector<1x50xf32> to vector<2x50xf32>
    %114 = arith.addf %111, %113 : vector<2x50xf32>
    %cst_57 = arith.constant 0.000000e+00 : f32
    %115 = vector.broadcast %cst_57 : f32 to vector<2x50xf32>
    %116 = arith.maximumf %114, %115 : vector<2x50xf32>
    %c0_58 = arith.constant 0 : index
    %c0_59 = arith.constant 0 : index
    %117 = vector.load %arg4[%c0_58, %c0_59] : memref<50x2xf32, #tpu.memory_space<vmem>>, vector<50x2xf32>
    %cst_60 = arith.constant dense<0.000000e+00> : vector<2x2xf32>
    %118 = tpu.matmul %116, %117, %cst_60 {dimension_numbers = #tpu.dot_dimension_numbers<[1], [0], [0], [1], [0, 0, 1, 1], [], []>} : vector<2x50xf32>, vector<50x2xf32>, vector<2x2xf32> -> vector<2x2xf32>
    %c0_61 = arith.constant 0 : index
    %c1408 = arith.constant 1408 : index
    %119 = vector.load %arg5[%c0_61, %c1408] : memref<1x1536xf32, #tpu.memory_space<vmem>>, vector<1x2xf32>
    %120 = vector.broadcast %119 : vector<1x2xf32> to vector<2x2xf32>
    %121 = arith.addf %118, %120 : vector<2x2xf32>
    %cst_62 = arith.constant dense<0xFF800000> : vector<2xf32>
    %122 = vector.multi_reduction <maximumf>, %121, %cst_62 [1] : vector<2x2xf32> to vector<2xf32>
    %123 = vector.shape_cast %122 : vector<2xf32> to vector<2x1xf32>
    %124 = vector.broadcast %123 : vector<2x1xf32> to vector<2x2xf32>
    %125 = arith.subf %121, %124 : vector<2x2xf32>
    %126 = math.exp %125 : vector<2x2xf32>
    %cst_63 = arith.constant dense<0.000000e+00> : vector<2xf32>
    %127 = vector.multi_reduction <add>, %126, %cst_63 [1] : vector<2x2xf32> to vector<2xf32>
    %128 = vector.shape_cast %127 : vector<2xf32> to vector<2x1xf32>
    %129 = vector.broadcast %128 : vector<2x1xf32> to vector<2x2xf32>
    %130 = arith.divf %126, %129 : vector<2x2xf32>
    %c0_64 = arith.constant 0 : index
    %c0_65 = arith.constant 0 : index
    %131 = vector.load %arg9[%c0_64, %c0_65] : memref<2x2xf32, #tpu.memory_space<vmem>>, vector<2x2xf32>
    tpu.vector_store %arg9[%c0_64, %c0_65], %130 {strides = array<i32>} : memref<2x2xf32, #tpu.memory_space<vmem>>, vector<2x2xf32>,
    return
  }
}

</mosaic_0001>

<llo_original>
// kernel: tpu_custom_call.1
$region0: #{tpu_custom_call.1}
  #allocation0 [shape = 'u32[]', space=smem, size = 0x4, offset = 0x4, fixed_abs, tag = 'smem constant byte address 0x4 - core index']
  #allocation1 [shape = 'u32[72,128]{1,0:T(1,128)}', space=vmem, size = 0x9000, scoped, tag = 'internal scratch']
  %s0 = inlined_call_operand.vmem [shape: s32[16,1], index: 0, kind: input, shape index: {}]
  %s1 = inlined_call_operand.vmem [shape: f32[100,32], index: 1, kind: input, shape index: {}]
  %s2 = inlined_call_operand.vmem [shape: f32[16,32], index: 2, kind: input, shape index: {}]
  %s3 = inlined_call_operand.hbm [shape: f32[32,1024], index: 3, kind: input, shape index: {}]
  %s4 = inlined_call_operand.vmem [shape: f32[50,2], index: 4, kind: input, shape index: {}]
  %s5 = inlined_call_operand.vmem [shape: f32[1,1536], index: 5, kind: input, shape index: {}]
  %s6 = inlined_call_operand.vmem [shape: f32[4,32], index: 6, kind: input, shape index: {}]
  %s7 = inlined_call_operand.vmem [shape: f32[2,16], index: 7, kind: input, shape index: {}]
  %s8 = inlined_call_operand.vmem [shape: f32[16,16], index: 8, kind: input, shape index: {}]
  %s9 = inlined_call_operand.hbm [shape: f32[2,2], index: 9, kind: output, shape index: {}]
  %s10 = sld [smem:[#allocation0]]
  $region50: #{tpu_custom_call.1} parent=0
    _
  %s12 = ssub.s32 1, %s10
  %s13 = scalar_select 0, %s12, %s10
  $region1: #{tpu_custom_call.1} parent=0
    #allocation2 [shape = 'u8[131072]{0}', space=vmem, size = 0x20000, scoped, tag = 'input window, operand 3, single buffered']
    #allocation3 [shape = 's32[1]{0}', space=sflag, size = 0x4, scoped, tag = 'scoped memory for tpu_custom_call.1']
    #allocation4 [shape = 's32[1]{0}', space=sflag, size = 0x4, scoped, tag = 'scoped memory for tpu_custom_call.1']
    #allocation5 [shape = 'u8[1024]{0}', space=vmem, size = 0x400, scoped, tag = 'output window, operand 0, single buffered']
    %14 = vsyncpa [#allocation3], 0
    %15 = vsyncpa [#allocation4], 0
    // Predicated region
    $region2: #{tpu_custom_call.1} parent=1 // pred_check
      _
    $region3: #{tpu_custom_call.1} parent=1 // pred_check_branch
      %17 = sbr.rel (0) target = $region5
    $region4: #{tpu_custom_call.1} parent=1 // pred_region
      _
    $region5: #{tpu_custom_call.1} parent=1 // pred_fallthru
      _
    // Predicated region
    $region6: #{tpu_custom_call.1} parent=1 // pred_check
      _
    $region7: #{tpu_custom_call.1} parent=1 // pred_check_branch
      %19 = sbr.rel (0) target = $region9
    $region8: #{tpu_custom_call.1} parent=1 // pred_region
      _
    $region9: #{tpu_custom_call.1} parent=1 // pred_fallthru
      _
    // Predicated region
    $region10: #{tpu_custom_call.1} parent=1 // pred_check
      _
    $region11: #{tpu_custom_call.1} parent=1 // pred_check_branch
      %21 = sbr.rel (0) target = $region13
    $region12: #{tpu_custom_call.1} parent=1 // pred_region
      _
    $region13: #{tpu_custom_call.1} parent=1 // pred_fallthru
      _
    // Predicated region
    $region14: #{tpu_custom_call.1} parent=1 // pred_check
      _
    $region15: #{tpu_custom_call.1} parent=1 // pred_check_branch
      %23 = sbr.rel (0) target = $region17
    $region16: #{tpu_custom_call.1} parent=1 // pred_region
      %25 = vsyncadd [#allocation3], 0
      %s26 = sshll.u32 %s3, 4
      %s27 = int_to_ptr.hbm [resolvable:$true] %s26
      %s28 = sshll.u32 [#allocation2], 4
      %s29 = int_to_ptr.vmem [resolvable:$true] %s28
      %34 = dma.hbm_to_vmem [thread:$0]  %s27, 4096, %s29, [#allocation3], 1024, 1024, 64
    $region17: #{tpu_custom_call.1} parent=1 // pred_fallthru
      _
    // Predicated region
    $region18: #{tpu_custom_call.1} parent=1 // pred_check
      _
    $region19: #{tpu_custom_call.1} parent=1 // pred_check_branch
      %36 = sbr.rel (0) target = $region21
    $region20: #{tpu_custom_call.1} parent=1 // pred_region
      _
    $region21: #{tpu_custom_call.1} parent=1 // pred_fallthru
      _
    // Predicated region
    $region22: #{tpu_custom_call.1} parent=1 // pred_check
      _
    $region23: #{tpu_custom_call.1} parent=1 // pred_check_branch
      %38 = sbr.rel (0) target = $region25
    $region24: #{tpu_custom_call.1} parent=1 // pred_region
      _
    $region25: #{tpu_custom_call.1} parent=1 // pred_fallthru
      _
    // Predicated region
    $region26: #{tpu_custom_call.1} parent=1 // pred_check
      _
    $region27: #{tpu_custom_call.1} parent=1 // pred_check_branch
      %40 = sbr.rel (0) target = $region29
    $region28: #{tpu_custom_call.1} parent=1 // pred_region
      _
    $region29: #{tpu_custom_call.1} parent=1 // pred_fallthru
      _
    // Predicated region
    $region30: #{tpu_custom_call.1} parent=1 // pred_check
      _
    $region31: #{tpu_custom_call.1} parent=1 // pred_check_branch
      %42 = sbr.rel (0) target = $region33
    $region32: #{tpu_custom_call.1} parent=1 // pred_region
      _
    $region33: #{tpu_custom_call.1} parent=1 // pred_fallthru
      _
    // Predicated region
    $region34: #{tpu_custom_call.1} parent=1 // pred_check
      _
    $region35: #{tpu_custom_call.1} parent=1 // pred_check_branch
      %44 = sbr.rel (0) target = $region37
    $region36: #{tpu_custom_call.1} parent=1 // pred_region
      _
    $region37: #{tpu_custom_call.1} parent=1 // pred_fallthru
      _
    // Predicated region
    $region38: #{tpu_custom_call.1} parent=1 // pred_check
      _
    $region39: #{tpu_custom_call.1} parent=1 // pred_check_branch
      %46 = sbr.rel (0) target = $region41
    $region40: #{tpu_custom_call.1} parent=1 // pred_region
      %48 = dma.done [#allocation3], 4096
    $region41: #{tpu_custom_call.1} parent=1 // pred_fallthru
      _
    %v49 = vld [vmem:[%s0] sm:$0xff]
    %v50 = vld [vmem:[%s0 + $0x8] sm:$0xff]
    %v51 = vlaneseq
    %v52 = vand.u32 %v51, 127
    %53 = vset.pattern.permute.xlu0 0
    %54 = vperm.xlu0 %53, %v49
    %v55 = vpop.permute.xlu0 %54
    %56 = vset.pattern.permute.xlu0 0
    %57 = vperm.xlu0 %56, %v50
    %v58 = vpop.permute.xlu0 %57
    %vm59 = vcmp.eq.s32.totalorder %v55, %v52
    %vm60 = vcmp.eq.s32.totalorder %v58, %v52
    %v61 = vsel %vm59, 1, 0
    %v62 = vsel %vm60, 1, 0
    %v63 = vcvt.s32.f32 %v61
    %v64 = vcvt.s32.f32 %v62
    %v65 = vld [vmem:[%s1] sm:$0xff]
    %v66 = vld [vmem:[%s1 + $0x8] sm:$0xff]
    %v67 = vld [vmem:[%s1 + $0x10] sm:$0xff]
    %v68 = vld [vmem:[%s1 + $0x18] sm:$0xff]
    %v69 = vld [vmem:[%s1 + $0x20] sm:$0xff]
    %v70 = vld [vmem:[%s1 + $0x28] sm:$0xff]
    %v71 = vld [vmem:[%s1 + $0x30] sm:$0xff]
    %v72 = vld [vmem:[%s1 + $0x38] sm:$0xff]
    %v73 = vld [vmem:[%s1 + $0x40] sm:$0xff]
    %v74 = vld [vmem:[%s1 + $0x48] sm:$0xff]
    %v75 = vld [vmem:[%s1 + $0x50] sm:$0xff]
    %v76 = vld [vmem:[%s1 + $0x58] sm:$0xff]
    %v77 = vld [vmem:[%s1 + $0x60] sm:$0xf]
    %v78 = vld [vmem:[%s2] sm:$0xff]
    %v79 = vld [vmem:[%s2 + $0x8] sm:$0xff]
    %vm80 = vcmask 818176
    %v82 = vsel %vm80, %v63, 0
    %v85 = vsel %vm80, %v64, 0
    %vm87 = vcmask 1043456
    %v89 = vsel %vm87, %v77, 0
    %91 = vmatpush.msra.mxu0 0.0
    %92 = vmatpush.msra.mxu0 0.0
    %93 = vmatpush.msra.mxu0 0.0
    %94 = vmatpush.msra.mxu0 %v89
    %95 = vmatpush.msra.mxu0 %v76
    %96 = vmatpush.msra.mxu0 %v75
    %97 = vmatpush.msra.mxu0 %v74
    %98 = vmatpush.msra.mxu0 %v73
    %99 = vmatpush.msra.mxu0 %v72
    %100 = vmatpush.msra.mxu0 %v71
    %101 = vmatpush.msra.mxu0 %v70
    %102 = vmatpush.msra.mxu0 %v69
    %103 = vmatpush.msra.mxu0 %v68
    %104 = vmatpush.msra.mxu0 %v67
    %105 = vmatpush.msra.mxu0 %v66
    %106 = vmatpush.msra.mxu0 %v65
    %107 = vmatmul.f32.gmra.mxu0 %v82
    %v108 = vpop.f32.mrf.mxu0
    %v109 = vadd.f32 %v78, %v108
    %110 = vmatmul.f32.gmra.mxu0 %v85
    %v111 = vpop.f32.mrf.mxu0
    %v112 = vadd.f32 %v79, %v111
    %113 = vdwg.mxu0
    %v114 = vld [vmem:[#allocation2] sm:$0xff]
    %v115 = vld [vmem:[#allocation2 + $0x8] sm:$0xff]
    %v116 = vld [vmem:[#allocation2 + $0x10] sm:$0xff]
    %v117 = vld [vmem:[#allocation2 + $0x40] sm:$0xff]
    %v118 = vld [vmem:[#allocation2 + $0x48] sm:$0xff]
    %v119 = vld [vmem:[#allocation2 + $0x50] sm:$0xff]
    %v120 = vld [vmem:[#allocation2 + $0x80] sm:$0xff]
    %v121 = vld [vmem:[#allocation2 + $0x88] sm:$0xff]
    %v122 = vld [vmem:[#allocation2 + $0x90] sm:$0xff]
    %v123 = vld [vmem:[#allocation2 + $0xc0] sm:$0xff]
    %v124 = vld [vmem:[#allocation2 + $0xc8] sm:$0xff]
    %v125 = vld [vmem:[#allocation2 + $0xd0] sm:$0xff]
    %v126 = vld [vmem:[%s5] sm:$0x7]
    %v128 = vperm.slane %v126, 0
    %v129 = vperm.slane %v126, 1
    %v130 = vperm.slane %v126, 2
    %vm134 = vcmask 261120
    %v136 = vsel %vm134, %v109, 0
    %v139 = vsel %vm134, %v112, 0
    %141 = vmatpush.msra.mxu0 0.0
    %142 = vmatpush.msra.mxu0 0.0
    %143 = vmatpush.msra.mxu0 0.0
    %144 = vmatpush.msra.mxu0 0.0
    %145 = vmatpush.msra.mxu0 0.0
    %146 = vmatpush.msra.mxu0 0.0
    %147 = vmatpush.msra.mxu0 0.0
    %148 = vmatpush.msra.mxu0 0.0
    %149 = vmatpush.msra.mxu0 0.0
    %150 = vmatpush.msra.mxu0 0.0
    %151 = vmatpush.msra.mxu0 0.0
    %152 = vmatpush.msra.mxu0 0.0
    %153 = vmatpush.msra.mxu0 %v123
    %154 = vmatpush.msra.mxu0 %v120
    %155 = vmatpush.msra.mxu0 %v117
    %156 = vmatpush.msra.mxu0 %v114
    %157 = vmatmul.f32.gmra.mxu0 %v136
    %v158 = vpop.f32.mrf.mxu0
    %v159 = vadd.f32 %v128, %v158
    %160 = vmatmul.f32.gmra.mxu0 %v139
    %v161 = vpop.f32.mrf.mxu0
    %v162 = vadd.f32 %v128, %v161
    %163 = vdwg.mxu0
    %164 = vmatpush.msra.mxu0 0.0
    %165 = vmatpush.msra.mxu0 0.0
    %166 = vmatpush.msra.mxu0 0.0
    %167 = vmatpush.msra.mxu0 0.0
    %168 = vmatpush.msra.mxu0 0.0
    %169 = vmatpush.msra.mxu0 0.0
    %170 = vmatpush.msra.mxu0 0.0
    %171 = vmatpush.msra.mxu0 0.0
    %172 = vmatpush.msra.mxu0 0.0
    %173 = vmatpush.msra.mxu0 0.0
    %174 = vmatpush.msra.mxu0 0.0
    %175 = vmatpush.msra.mxu0 0.0
    %176 = vmatpush.msra.mxu0 %v124
    %177 = vmatpush.msra.mxu0 %v121
    %178 = vmatpush.msra.mxu0 %v118
    %179 = vmatpush.msra.mxu0 %v115
    %180 = vmatmul.f32.gmra.mxu0 %v136
    %v181 = vpop.f32.mrf.mxu0
    %v182 = vadd.f32 %v129, %v181
    %183 = vmatmul.f32.gmra.mxu0 %v139
    %v184 = vpop.f32.mrf.mxu0
    %v185 = vadd.f32 %v129, %v184
    %186 = vdwg.mxu0
    %187 = vmatpush.msra.mxu0 0.0
    %188 = vmatpush.msra.mxu0 0.0
    %189 = vmatpush.msra.mxu0 0.0
    %190 = vmatpush.msra.mxu0 0.0
    %191 = vmatpush.msra.mxu0 0.0
    %192 = vmatpush.msra.mxu0 0.0
    %193 = vmatpush.msra.mxu0 0.0
    %194 = vmatpush.msra.mxu0 0.0
    %195 = vmatpush.msra.mxu0 0.0
    %196 = vmatpush.msra.mxu0 0.0
    %197 = vmatpush.msra.mxu0 0.0
    %198 = vmatpush.msra.mxu0 0.0
    %199 = vmatpush.msra.mxu0 %v125
    %200 = vmatpush.msra.mxu0 %v122
    %201 = vmatpush.msra.mxu0 %v119
    %202 = vmatpush.msra.mxu0 %v116
    %203 = vmatmul.f32.gmra.mxu0 %v136
    %v204 = vpop.f32.mrf.mxu0
    %v205 = vadd.f32 %v130, %v204
    %206 = vmatmul.f32.gmra.mxu0 %v139
    %v207 = vpop.f32.mrf.mxu0
    %v208 = vadd.f32 %v130, %v207
    %209 = vdwg.mxu0
    %v210 = vld [vmem:[#allocation2 + $0x38] sm:$0xff]
    %v211 = vld [vmem:[#allocation2 + $0x78] sm:$0xff]
    %v212 = vld [vmem:[#allocation2 + $0xb8] sm:$0xff]
    %v213 = vld [vmem:[#allocation2 + $0xf8] sm:$0xff]
    %v214 = vld [vmem:[%s6] sm:$0xf]
    %v215 = vmul.f32 %v159, %v182
    %v216 = vmul.f32 %v162, %v185
    %v218 = vsel %vm134, %v215, 0
    %v221 = vsel %vm134, %v216, 0
    %223 = vmatpush.msra.mxu0 0.0
    %224 = vmatpush.msra.mxu0 0.0
    %225 = vmatpush.msra.mxu0 0.0
    %226 = vmatpush.msra.mxu0 0.0
    %227 = vmatpush.msra.mxu0 0.0
    %228 = vmatpush.msra.mxu0 0.0
    %229 = vmatpush.msra.mxu0 0.0
    %230 = vmatpush.msra.mxu0 0.0
    %231 = vmatpush.msra.mxu0 0.0
    %232 = vmatpush.msra.mxu0 0.0
    %233 = vmatpush.msra.mxu0 0.0
    %234 = vmatpush.msra.mxu0 0.0
    %235 = vmatpush.msra.mxu0 %v213
    %236 = vmatpush.msra.mxu0 %v212
    %237 = vmatpush.msra.mxu0 %v211
    %238 = vmatpush.msra.mxu0 %v210
    %239 = vmatmul.f32.gmra.mxu0 %v218
    %v240 = vpop.f32.mrf.mxu0
    %v241 = vadd.f32 0.0, %v240
    %242 = vmatmul.f32.gmra.mxu0 %v221
    %v243 = vpop.f32.mrf.mxu0
    %v244 = vadd.f32 0.0, %v243
    %245 = vdwg.mxu0
    %v246 = vld [vmem:[%s8] sm:$0xff]
    %v247 = vld [vmem:[%s8 + $0x8] sm:$0xff]
    %vm248 = vcmask 130048
    %v250 = vsel %vm248, %v246, 0
    %v253 = vsel %vm248, %v247, 0
    %255 = vmatpush.msra.mxu0 0.0
    %256 = vmatpush.msra.mxu0 0.0
    %257 = vmatpush.msra.mxu0 0.0
    %258 = vmatpush.msra.mxu0 0.0
    %259 = vmatpush.msra.mxu0 0.0
    %260 = vmatpush.msra.mxu0 0.0
    %261 = vmatpush.msra.mxu0 0.0
    %262 = vmatpush.msra.mxu0 0.0
    %263 = vmatpush.msra.mxu0 0.0
    %264 = vmatpush.msra.mxu0 0.0
    %265 = vmatpush.msra.mxu0 0.0
    %266 = vmatpush.msra.mxu0 0.0
    %267 = vmatpush.msra.mxu0 0.0
    %268 = vmatpush.msra.mxu0 0.0
    %269 = vmatpush.msra.mxu0 %v185
    %270 = vmatpush.msra.mxu0 %v182
    %271 = vmatmul.f32.gmra.mxu0 %v250
    %v272 = vpop.f32.mrf.mxu0
    %v273 = vadd.f32 0.0, %v272
    %274 = vmatmul.f32.gmra.mxu0 %v253
    %v275 = vpop.f32.mrf.mxu0
    %v276 = vadd.f32 0.0, %v275
    %277 = vdwg.mxu0
    %278 = vmatpush.msra.mxu0 0.0
    %279 = vmatpush.msra.mxu0 0.0
    %280 = vmatpush.msra.mxu0 0.0
    %281 = vmatpush.msra.mxu0 0.0
    %282 = vmatpush.msra.mxu0 0.0
    %283 = vmatpush.msra.mxu0 0.0
    %284 = vmatpush.msra.mxu0 0.0
    %285 = vmatpush.msra.mxu0 0.0
    %286 = vmatpush.msra.mxu0 0.0
    %287 = vmatpush.msra.mxu0 0.0
    %288 = vmatpush.msra.mxu0 0.0
    %289 = vmatpush.msra.mxu0 0.0
    %290 = vmatpush.msra.mxu0 0.0
    %291 = vmatpush.msra.mxu0 0.0
    %292 = vmatpush.msra.mxu0 %v208
    %293 = vmatpush.msra.mxu0 %v205
    %294 = vmatmul.f32.gmra.mxu0 %v250
    %v295 = vpop.f32.mrf.mxu0
    %v296 = vadd.f32 0.0, %v295
    %297 = vmatmul.f32.gmra.mxu0 %v253
    %v298 = vpop.f32.mrf.mxu0
    %v299 = vadd.f32 0.0, %v298
    %300 = vdwg.mxu0
    %v301 = vmul.f32 %v159, %v273
    %v302 = vmul.f32 %v162, %v276
    %v304 = vsel %vm134, %v301, 0
    %v307 = vsel %vm134, %v302, 0
    %309 = vmatpush.msra.mxu0 0.0
    %310 = vmatpush.msra.mxu0 0.0
    %311 = vmatpush.msra.mxu0 0.0
    %312 = vmatpush.msra.mxu0 0.0
    %313 = vmatpush.msra.mxu0 0.0
    %314 = vmatpush.msra.mxu0 0.0
    %315 = vmatpush.msra.mxu0 0.0
    %316 = vmatpush.msra.mxu0 0.0
    %317 = vmatpush.msra.mxu0 0.0
    %318 = vmatpush.msra.mxu0 0.0
    %319 = vmatpush.msra.mxu0 0.0
    %320 = vmatpush.msra.mxu0 0.0
    %321 = vmatpush.msra.mxu0 %v213
    %322 = vmatpush.msra.mxu0 %v212
    %323 = vmatpush.msra.mxu0 %v211
    %324 = vmatpush.msra.mxu0 %v210
    %325 = vmatmul.f32.gmra.mxu0 %v304
    %v326 = vpop.f32.mrf.mxu0
    %v327 = vadd.f32 0.0, %v326
    %328 = vmatmul.f32.gmra.mxu0 %v307
    %v329 = vpop.f32.mrf.mxu0
    %v330 = vadd.f32 0.0, %v329
    %331 = vdwg.mxu0
    %v332 = vmax.f32 %v241, %v327
    %v333 = vmax.f32 %v244, %v330
    %v334 = vsub.f32 %v241, %v332
    %v335 = vsub.f32 %v244, %v333
    %v336 = vmul.f32 %v334, 1.442695
    %v337 = vpow.pop %v336
    %v338 = vmul.f32 %v335, 1.442695
    %v339 = vpow.pop %v338
    %v340 = vsub.f32 %v327, %v332
    %v341 = vsub.f32 %v330, %v333
    %v342 = vmul.f32 %v340, 1.442695
    %v343 = vpow.pop %v342
    %v344 = vmul.f32 %v341, 1.442695
    %v345 = vpow.pop %v344
    %v346 = vadd.f32 %v337, %v343
    %v347 = vadd.f32 %v339, %v345
    %vm348 = vcmask 31744
    %v350 = vsel %vm348, %v337, 0
    %v353 = vsel %vm348, %v339, 0
    %v356 = vsel %vm87, %v214, 0
    %358 = vmatpush.msra.mxu0 0.0
    %359 = vmatpush.msra.mxu0 0.0
    %360 = vmatpush.msra.mxu0 0.0
    %361 = vmatpush.msra.mxu0 0.0
    %362 = vmatpush.msra.mxu0 0.0
    %363 = vmatpush.msra.mxu0 0.0
    %364 = vmatpush.msra.mxu0 0.0
    %365 = vmatpush.msra.mxu0 0.0
    %366 = vmatpush.msra.mxu0 0.0
    %367 = vmatpush.msra.mxu0 0.0
    %368 = vmatpush.msra.mxu0 0.0
    %369 = vmatpush.msra.mxu0 0.0
    %370 = vmatpush.msra.mxu0 0.0
    %371 = vmatpush.msra.mxu0 0.0
    %372 = vmatpush.msra.mxu0 0.0
    %373 = vmatpush.msra.mxu0 %v356
    %374 = vmatmul.f32.gmra.mxu0 %v350
    %v375 = vpop.f32.mrf.mxu0
    %v376 = vadd.f32 0.0, %v375
    %377 = vmatmul.f32.gmra.mxu0 %v353
    %v378 = vpop.f32.mrf.mxu0
    %v379 = vadd.f32 0.0, %v378
    %380 = vdwg.mxu0
    %v381 = vmul.f32 %v376, %v205
    %v382 = vmul.f32 %v379, %v208
    %v384 = vsel %vm348, %v343, 0
    %v387 = vsel %vm348, %v345, 0
    %389 = vmatpush.msra.mxu0 0.0
    %390 = vmatpush.msra.mxu0 0.0
    %391 = vmatpush.msra.mxu0 0.0
    %392 = vmatpush.msra.mxu0 0.0
    %393 = vmatpush.msra.mxu0 0.0
    %394 = vmatpush.msra.mxu0 0.0
    %395 = vmatpush.msra.mxu0 0.0
    %396 = vmatpush.msra.mxu0 0.0
    %397 = vmatpush.msra.mxu0 0.0
    %398 = vmatpush.msra.mxu0 0.0
    %399 = vmatpush.msra.mxu0 0.0
    %400 = vmatpush.msra.mxu0 0.0
    %401 = vmatpush.msra.mxu0 0.0
    %402 = vmatpush.msra.mxu0 0.0
    %403 = vmatpush.msra.mxu0 0.0
    %404 = vmatpush.msra.mxu0 %v356
    %405 = vmatmul.f32.gmra.mxu0 %v384
    %v406 = vpop.f32.mrf.mxu0
    %v407 = vadd.f32 0.0, %v406
    %408 = vmatmul.f32.gmra.mxu0 %v387
    %v409 = vpop.f32.mrf.mxu0
    %v410 = vadd.f32 0.0, %v409
    %411 = vdwg.mxu0
    %v412 = vmul.f32 %v407, %v296
    %v413 = vmul.f32 %v410, %v299
    %v414 = vadd.f32 %v381, %v412
    %v415 = vadd.f32 %v382, %v413
    %v416 = vrcp.pop %v346
    %v417 = vrcp.pop %v347
    %v419 = vsel %vm348, %v416, 0
    %v422 = vsel %vm348, %v417, 0
    %424 = vmatpush.msra.mxu0 0.0
    %425 = vmatpush.msra.mxu0 0.0
    %426 = vmatpush.msra.mxu0 0.0
    %427 = vmatpush.msra.mxu0 0.0
    %428 = vmatpush.msra.mxu0 0.0
    %429 = vmatpush.msra.mxu0 0.0
    %430 = vmatpush.msra.mxu0 0.0
    %431 = vmatpush.msra.mxu0 0.0
    %432 = vmatpush.msra.mxu0 0.0
    %433 = vmatpush.msra.mxu0 0.0
    %434 = vmatpush.msra.mxu0 0.0
    %435 = vmatpush.msra.mxu0 0.0
    %436 = vmatpush.msra.mxu0 0.0
    %437 = vmatpush.msra.mxu0 0.0
    %438 = vmatpush.msra.mxu0 0.0
    %439 = vmatpush.msra.mxu0 %v356
    %440 = vmatmul.f32.gmra.mxu0 %v419
    %v441 = vpop.f32.mrf.mxu0
    %v442 = vadd.f32 0.0, %v441
    %443 = vmatmul.f32.gmra.mxu0 %v422
    %v444 = vpop.f32.mrf.mxu0
    %v445 = vadd.f32 0.0, %v444
    %446 = vdwg.mxu0
    %v447 = vmul.f32 %v414, %v442
    %v448 = vmul.f32 %v415, %v445
    %v449 = vld [vmem:[#allocation2 + $0x18] sm:$0xff]
    %v450 = vld [vmem:[#allocation2 + $0x58] sm:$0xff]
    %v451 = vld [vmem:[#allocation2 + $0x98] sm:$0xff]
    %v452 = vld [vmem:[#allocation2 + $0xd8] sm:$0xff]
    %v453 = vld [vmem:[%s5 + $0x3] sm:$0x1]
    %v455 = vperm.slane %v453, 0
    %v458 = vsel %vm134, %v447, 0
    %v461 = vsel %vm134, %v448, 0
    %463 = vmatpush.msra.mxu0 0.0
    %464 = vmatpush.msra.mxu0 0.0
    %465 = vmatpush.msra.mxu0 0.0
    %466 = vmatpush.msra.mxu0 0.0
    %467 = vmatpush.msra.mxu0 0.0
    %468 = vmatpush.msra.mxu0 0.0
    %469 = vmatpush.msra.mxu0 0.0
    %470 = vmatpush.msra.mxu0 0.0
    %471 = vmatpush.msra.mxu0 0.0
    %472 = vmatpush.msra.mxu0 0.0
    %473 = vmatpush.msra.mxu0 0.0
    %474 = vmatpush.msra.mxu0 0.0
    %475 = vmatpush.msra.mxu0 %v452
    %476 = vmatpush.msra.mxu0 %v451
    %477 = vmatpush.msra.mxu0 %v450
    %478 = vmatpush.msra.mxu0 %v449
    %479 = vmatmul.f32.gmra.mxu0 %v458
    %v480 = vpop.f32.mrf.mxu0
    %v481 = vadd.f32 %v455, %v480
    %482 = vmatmul.f32.gmra.mxu0 %v461
    %v483 = vpop.f32.mrf.mxu0
    %v484 = vadd.f32 %v455, %v483
    %485 = vdwg.mxu0
    %v486 = vadd.f32 %v109, %v481
    %v487 = vadd.f32 %v112, %v484
    %v488 = vld [vmem:[%s5 + $0x4] sm:$0x1]
    %v489 = vld [vmem:[%s5 + $0x5] sm:$0x1]
    %v490 = vsel %vm134, %v486, 0.0
    %491 = vadd.xlane.f32.xlu0 %v490
    %v492 = vpop.xlane.xlu0 %491
    %v493 = vsel %vm134, %v487, 0.0
    %494 = vadd.xlane.f32.xlu0 %v493
    %v495 = vpop.xlane.xlu0 %494
    %v496 = vrcp.pop 32.0
    %v497 = vmul.f32 32.0, %v496
    %v498 = vsub.f32 1.0, %v497
    %v499 = vmul.f32 %v496, %v498
    %v500 = vadd.f32 %v496, %v499
    %vm501 = vweird.f32 %v496
    %v502 = vsel %vm501, %v496, %v500
    %v503 = vmul.f32 %v492, %v502
    %v504 = vmul.f32 %v495, %v502
    %v505 = vsub.f32 %v486, %v503
    %v506 = vsub.f32 %v487, %v504
    %v507 = vmul.f32 %v505, %v505
    %v508 = vmul.f32 %v506, %v506
    %v509 = vsel %vm134, %v507, 0.0
    %510 = vadd.xlane.f32.xlu0 %v509
    %v511 = vpop.xlane.xlu0 %510
    %v512 = vsel %vm134, %v508, 0.0
    %513 = vadd.xlane.f32.xlu0 %v512
    %v514 = vpop.xlane.xlu0 %513
    %v515 = vmul.f32 %v511, %v502
    %v516 = vmul.f32 %v514, %v502
    %v517 = vadd.f32 %v515, 1e-05
    %v518 = vadd.f32 %v516, 1e-05
    %v519 = vrsqrt.pop %v517
    %v520 = vmul.f32 %v519, %v517
    %v521 = vmul.f32 %v520, %v519
    %v522 = vmul.f32 0.5, %v521
    %v523 = vsub.f32 1.5, %v522
    %v524 = vmul.f32 %v519, %v523
    %vm525 = vweird.f32 %v517
    %vm526 = vweird.f32 %v519
    %vm527 = vmor %vm525, %vm526
    %v528 = vsel %vm527, %v519, %v524
    %v529 = vrsqrt.pop %v518
    %v530 = vmul.f32 %v529, %v518
    %v531 = vmul.f32 %v530, %v529
    %v532 = vmul.f32 0.5, %v531
    %v533 = vsub.f32 1.5, %v532
    %v534 = vmul.f32 %v529, %v533
    %vm535 = vweird.f32 %v518
    %vm536 = vweird.f32 %v529
    %vm537 = vmor %vm535, %vm536
    %v538 = vsel %vm537, %v529, %v534
    %v539 = vmul.f32 %v505, %v528
    %v540 = vmul.f32 %v506, %v538
    %v542 = vperm.slane %v488, 0
    %v544 = vmul.f32 %v539, %v542
    %v545 = vmul.f32 %v540, %v542
    %v547 = vperm.slane %v489, 0
    %v549 = vadd.f32 %v544, %v547
    %v550 = vadd.f32 %v545, %v547
    %v551 = vld [vmem:[#allocation2 + $0x20] sm:$0xff]
    %v552 = vld [vmem:[#allocation2 + $0x60] sm:$0xff]
    %v553 = vld [vmem:[#allocation2 + $0xa0] sm:$0xff]
    %v554 = vld [vmem:[#allocation2 + $0xe0] sm:$0xff]
    %v555 = vld [vmem:[%s5 + $0x6] sm:$0x1]
    %v557 = vperm.slane %v555, 0
    %v560 = vsel %vm134, %v549, 0
    %v563 = vsel %vm134, %v550, 0
    %565 = vmatpush.msra.mxu0 0.0
    %566 = vmatpush.msra.mxu0 0.0
    %567 = vmatpush.msra.mxu0 0.0
    %568 = vmatpush.msra.mxu0 0.0
    %569 = vmatpush.msra.mxu0 0.0
    %570 = vmatpush.msra.mxu0 0.0
    %571 = vmatpush.msra.mxu0 0.0
    %572 = vmatpush.msra.mxu0 0.0
    %573 = vmatpush.msra.mxu0 0.0
    %574 = vmatpush.msra.mxu0 0.0
    %575 = vmatpush.msra.mxu0 0.0
    %576 = vmatpush.msra.mxu0 0.0
    %577 = vmatpush.msra.mxu0 %v554
    %578 = vmatpush.msra.mxu0 %v553
    %579 = vmatpush.msra.mxu0 %v552
    %580 = vmatpush.msra.mxu0 %v551
    %581 = vmatmul.f32.gmra.mxu0 %v560
    %v582 = vpop.f32.mrf.mxu0
    %v583 = vadd.f32 %v557, %v582
    %584 = vmatmul.f32.gmra.mxu0 %v563
    %v585 = vpop.f32.mrf.mxu0
    %v586 = vadd.f32 %v557, %v585
    %587 = vdwg.mxu0
    %v588 = vmax.f32 %v583, 0.0
    %v589 = vmax.f32 %v586, 0.0
    %v590 = vld [vmem:[#allocation2 + $0x28] sm:$0xff]
    %v591 = vld [vmem:[#allocation2 + $0x68] sm:$0xff]
    %v592 = vld [vmem:[#allocation2 + $0xa8] sm:$0xff]
    %v593 = vld [vmem:[#allocation2 + $0xe8] sm:$0xff]
    %v594 = vld [vmem:[%s5 + $0x7] sm:$0x1]
    %v596 = vperm.slane %v594, 0
    %v599 = vsel %vm134, %v588, 0
    %v602 = vsel %vm134, %v589, 0
    %604 = vmatpush.msra.mxu0 0.0
    %605 = vmatpush.msra.mxu0 0.0
    %606 = vmatpush.msra.mxu0 0.0
    %607 = vmatpush.msra.mxu0 0.0
    %608 = vmatpush.msra.mxu0 0.0
    %609 = vmatpush.msra.mxu0 0.0
    %610 = vmatpush.msra.mxu0 0.0
    %611 = vmatpush.msra.mxu0 0.0
    %612 = vmatpush.msra.mxu0 0.0
    %613 = vmatpush.msra.mxu0 0.0
    %614 = vmatpush.msra.mxu0 0.0
    %615 = vmatpush.msra.mxu0 0.0
    %616 = vmatpush.msra.mxu0 %v593
    %617 = vmatpush.msra.mxu0 %v592
    %618 = vmatpush.msra.mxu0 %v591
    %619 = vmatpush.msra.mxu0 %v590
    %620 = vmatmul.f32.gmra.mxu0 %v599
    %v621 = vpop.f32.mrf.mxu0
    %v622 = vadd.f32 %v596, %v621
    %623 = vmatmul.f32.gmra.mxu0 %v602
    %v624 = vpop.f32.mrf.mxu0
    %v625 = vadd.f32 %v596, %v624
    %626 = vdwg.mxu0
    %v627 = vadd.f32 %v549, %v622
    %v628 = vadd.f32 %v550, %v625
    %v629 = vld [vmem:[%s5 + $0x8] sm:$0x1]
    %v630 = vld [vmem:[%s5 + $0x9] sm:$0x1]
    %v631 = vsel %vm134, %v627, 0.0
    %632 = vadd.xlane.f32.xlu0 %v631
    %v633 = vpop.xlane.xlu0 %632
    %v634 = vsel %vm134, %v628, 0.0
    %635 = vadd.xlane.f32.xlu0 %v634
    %v636 = vpop.xlane.xlu0 %635
    %v637 = vmul.f32 %v633, %v502
    %v638 = vmul.f32 %v636, %v502
    %v639 = vsub.f32 %v627, %v637
    %v640 = vsub.f32 %v628, %v638
    %v641 = vmul.f32 %v639, %v639
    %v642 = vmul.f32 %v640, %v640
    %v643 = vsel %vm134, %v641, 0.0
    %644 = vadd.xlane.f32.xlu0 %v643
    %v645 = vpop.xlane.xlu0 %644
    %v646 = vsel %vm134, %v642, 0.0
    %647 = vadd.xlane.f32.xlu0 %v646
    %v648 = vpop.xlane.xlu0 %647
    %v649 = vmul.f32 %v645, %v502
    %v650 = vmul.f32 %v648, %v502
    %v651 = vadd.f32 %v649, 1e-05
    %v652 = vadd.f32 %v650, 1e-05
    %v653 = vrsqrt.pop %v651
    %v654 = vmul.f32 %v653, %v651
    %v655 = vmul.f32 %v654, %v653
    %v656 = vmul.f32 0.5, %v655
    %v657 = vsub.f32 1.5, %v656
    %v658 = vmul.f32 %v653, %v657
    %vm659 = vweird.f32 %v651
    %vm660 = vweird.f32 %v653
    %vm661 = vmor %vm659, %vm660
    %v662 = vsel %vm661, %v653, %v658
    %v663 = vrsqrt.pop %v652
    %v664 = vmul.f32 %v663, %v652
    %v665 = vmul.f32 %v664, %v663
    %v666 = vmul.f32 0.5, %v665
    %v667 = vsub.f32 1.5, %v666
    %v668 = vmul.f32 %v663, %v667
    %vm669 = vweird.f32 %v652
    %vm670 = vweird.f32 %v663
    %vm671 = vmor %vm669, %vm670
    %v672 = vsel %vm671, %v663, %v668
    %v673 = vmul.f32 %v639, %v662
    %v674 = vmul.f32 %v640, %v672
    %v676 = vperm.slane %v629, 0
    %v678 = vmul.f32 %v673, %v676
    %v679 = vmul.f32 %v674, %v676
    %v681 = vperm.slane %v630, 0
    %v683 = vadd.f32 %v678, %v681
    %v684 = vadd.f32 %v679, %v681
    %v685 = vld [vmem:[%s7] sm:$0x3]
    %v687 = vsel %vm248, %v685, 0
    %689 = vmatpush.msra.mxu0 0.0
    %690 = vmatpush.msra.mxu0 0.0
    %691 = vmatpush.msra.mxu0 0.0
    %692 = vmatpush.msra.mxu0 0.0
    %693 = vmatpush.msra.mxu0 0.0
    %694 = vmatpush.msra.mxu0 0.0
    %695 = vmatpush.msra.mxu0 0.0
    %696 = vmatpush.msra.mxu0 0.0
    %697 = vmatpush.msra.mxu0 0.0
    %698 = vmatpush.msra.mxu0 0.0
    %699 = vmatpush.msra.mxu0 0.0
    %700 = vmatpush.msra.mxu0 0.0
    %701 = vmatpush.msra.mxu0 0.0
    %702 = vmatpush.msra.mxu0 0.0
    %703 = vmatpush.msra.mxu0 %v684
    %704 = vmatpush.msra.mxu0 %v683
    %705 = vmatmul.f32.gmra.mxu0 %v687
    %v706 = vpop.f32.mrf.mxu0
    %v707 = vadd.f32 0.0, %v706
    %708 = vdwg.mxu0
    %v709 = vld [vmem:[#allocation2 + $0x30] sm:$0xff]
    %v710 = vld [vmem:[#allocation2 + $0x70] sm:$0xff]
    %v711 = vld [vmem:[#allocation2 + $0xb0] sm:$0xff]
    %v712 = vld [vmem:[#allocation2 + $0xf0] sm:$0xff]
    %v713 = vld [vmem:[%s5 + $0xa] sm:$0x1]
    %v715 = vperm.slane %v713, 0
    %v718 = vsel %vm134, %v707, 0
    %720 = vmatpush.msra.mxu0 0.0
    %721 = vmatpush.msra.mxu0 0.0
    %722 = vmatpush.msra.mxu0 0.0
    %723 = vmatpush.msra.mxu0 0.0
    %724 = vmatpush.msra.mxu0 0.0
    %725 = vmatpush.msra.mxu0 0.0
    %726 = vmatpush.msra.mxu0 0.0
    %727 = vmatpush.msra.mxu0 0.0
    %728 = vmatpush.msra.mxu0 0.0
    %729 = vmatpush.msra.mxu0 0.0
    %730 = vmatpush.msra.mxu0 0.0
    %731 = vmatpush.msra.mxu0 0.0
    %732 = vmatpush.msra.mxu0 %v712
    %733 = vmatpush.msra.mxu0 %v711
    %734 = vmatpush.msra.mxu0 %v710
    %735 = vmatpush.msra.mxu0 %v709
    %736 = vmatmul.f32.gmra.mxu0 %v718
    %v737 = vpop.f32.mrf.mxu0
    %v738 = vadd.f32 %v715, %v737
    %739 = vdwg.mxu0
    %v740 = vmax.f32 %v738, 0.0
    %v741 = vld [vmem:[%s4] sm:$0xff]
    %v742 = vld [vmem:[%s4 + $0x8] sm:$0xff]
    %v743 = vld [vmem:[%s4 + $0x10] sm:$0xff]
    %v744 = vld [vmem:[%s4 + $0x18] sm:$0xff]
    %v745 = vld [vmem:[%s4 + $0x20] sm:$0xff]
    %v746 = vld [vmem:[%s4 + $0x28] sm:$0xff]
    %v747 = vld [vmem:[%s4 + $0x30] sm:$0x3]
    %v748 = vld [vmem:[%s5 + $0xb] sm:$0x1]
    %v750 = vperm.slane %v748, 0
    %vm752 = vcmask 408576
    %v754 = vsel %vm752, %v740, 0
    %vm756 = vcmask 1041408
    %v758 = vsel %vm756, %v747, 0
    %760 = vmatpush.msra.mxu0 0.0
    %761 = vmatpush.msra.mxu0 0.0
    %762 = vmatpush.msra.mxu0 0.0
    %763 = vmatpush.msra.mxu0 0.0
    %764 = vmatpush.msra.mxu0 0.0
    %765 = vmatpush.msra.mxu0 0.0
    %766 = vmatpush.msra.mxu0 0.0
    %767 = vmatpush.msra.mxu0 0.0
    %768 = vmatpush.msra.mxu0 0.0
    %769 = vmatpush.msra.mxu0 %v758
    %770 = vmatpush.msra.mxu0 %v746
    %771 = vmatpush.msra.mxu0 %v745
    %772 = vmatpush.msra.mxu0 %v744
    %773 = vmatpush.msra.mxu0 %v743
    %774 = vmatpush.msra.mxu0 %v742
    %775 = vmatpush.msra.mxu0 %v741
    %776 = vmatmul.f32.gmra.mxu0 %v754
    %v777 = vpop.f32.mrf.mxu0
    %v778 = vadd.f32 %v750, %v777
    %779 = vdwg.mxu0
    %vm780 = vcmask 9216
    %v781 = vsel %vm780, %v778, -inf
    %782 = vmax.xlane.f32.xlu0 %v781
    %v783 = vpop.xlane.xlu0 %782
    %v784 = vsub.f32 %v778, %v783
    %v785 = vmul.f32 %v784, 1.442695
    %v786 = vpow.pop %v785
    %v787 = vsel %vm780, %v786, 0.0
    %788 = vadd.xlane.f32.xlu0 %v787
    %v789 = vpop.xlane.xlu0 %788
    %v790 = vrcp.pop %v789
    %v791 = vmul.f32 %v789, %v790
    %v792 = vsub.f32 1.0, %v791
    %v793 = vmul.f32 %v790, %v792
    %v794 = vadd.f32 %v790, %v793
    %vm795 = vweird.f32 %v789
    %vm796 = vweird.f32 %v790
    %vm797 = vmor %vm795, %vm796
    %v798 = vsel %vm797, %v790, %v794
    %v799 = vand.u32 2147483647, %v789
    %vm800 = vcmp.eq.f32.partialorder %v799, 8.507059e+37
    %v801 = vand.u32 %v789, 2147483648
    %v802 = vor.u32 1.1754944e-38, %v801
    %v803 = vsel %vm800, %v802, %v798
    %v804 = vmul.f32 %v786, %v803
    %805 = vst.msk [vmem:[#allocation5] sm:$0x3] %vm780, %v804
    // Predicated region
    $region42: #{tpu_custom_call.1} parent=1 // pred_check
      _
    $region43: #{tpu_custom_call.1} parent=1 // pred_check_branch
      %807 = sbr.rel (0) target = $region45
    $region44: #{tpu_custom_call.1} parent=1 // pred_region
      %809 = vsyncadd [#allocation4], 0
      %s811 = sshll.u32 [#allocation5], 4
      %s812 = int_to_ptr.vmem [resolvable:$true] %s811
      %s813 = sshll.u32 %s9, 4
      %s814 = int_to_ptr.hbm [resolvable:$true] %s813
      %816 = dma.vmem_to_hbm [thread:$0]  %s812, 32, %s814, [#allocation4]
    $region45: #{tpu_custom_call.1} parent=1 // pred_fallthru
      _
    // Predicated region
    $region46: #{tpu_custom_call.1} parent=1 // pred_check
      _
    $region47: #{tpu_custom_call.1} parent=1 // pred_check_branch
      %818 = sbr.rel (0) target = $region49
    $region48: #{tpu_custom_call.1} parent=1 // pred_region
      %820 = dma.done [#allocation4], 32
    $region49: #{tpu_custom_call.1} parent=1 // pred_fallthru
      _
    %821 = vsyncpa [#allocation3], 1
    %822 = vsyncpa [#allocation4], 1

</llo_original>
